<compile_context>
chip_gen: v6e
topology: v6e:2x2x1
jax: 0.10.0
libtpu: 0.0.40
codegen_flags: <defaults>
</compile_context>

<pallas_src>
import functools

import jax
import jax.numpy as jnp
from jax.experimental import pallas as pl
from jax.experimental.pallas import tpu as pltpu


def _round_up(x, m):
    return ((x + m - 1) // m) * m


def _ann_fused_kernel(x_ref, w0_ref, b0_ref, w_ref, b_ref, o_ref, *, n_layers):
    """One (tm, R) output tile: fc0 followed by (n_layers-1) x fc(relu(.)).

    Weight slabs are fully VMEM-resident (no reduction grid axis), the
    activation chain stays in vregs/VMEM, accumulation is f32 on the MXU, and
    the output is written once, lane-dense (last dim = R = 128).
    """
    # fc0: (tm, K) @ (K, R) + bias — f32 accumulate regardless of input dtype.
    y = jnp.dot(x_ref[...], w0_ref[...], preferred_element_type=jnp.float32)
    y = y + b0_ref[...].astype(jnp.float32)

    if n_layers > 1:
        # Hoist ref loads / bias upcast out of the unrolled loop (no CSE across
        # unrolled iterations otherwise).
        w = w_ref[...]
        b = b_ref[...].astype(jnp.float32)
        for _ in range(n_layers - 1):
            # dropout is identity in eval mode; relu in f32, cast back to the
            # weight dtype so bf16 weights take the native MXU path.
            a = jnp.maximum(y, 0.0).astype(w.dtype)
            y = jnp.dot(a, w, preferred_element_type=jnp.float32) + b

    o_ref[...] = y.astype(o_ref.dtype)


def ann_forward(params, x, n_ANNlayers=1, tm=None):
    """Pallas implementation of ANN.forward (dropout = eval-mode identity)."""
    N, K = x.shape
    w0_t = params["fc0_wt"]   # (K, R)  pre-transposed
    b0 = params["fc0_b2d"]    # (1, R)
    w_t = params["fc_wt"]     # (R, R)  pre-transposed
    b = params["fc_b2d"]      # (1, R)
    assert w0_t.shape[0] == K
    R = w0_t.shape[1]

    x_isz = jnp.dtype(x.dtype).itemsize
    w_isz = jnp.dtype(w0_t.dtype).itemsize

    # Batch tile: as large as a ~24 MiB double-buffered x budget allows (up to
    # 1024 rows) to amortize per-grid-step overhead, never larger than the
    # (8-aligned) batch itself.  No divisibility requirement: the grid uses
    # pl.cdiv and Pallas masks the ragged last tile.
    if tm is None:
        row_bytes = K * x_isz
        tm = 1024
        while tm > 8 and 2 * tm * row_bytes > (24 << 20):
            tm //= 2
        tm = max(8, min(tm, _round_up(N, 8)))
    grid_m = pl.cdiv(N, tm)

    # Explicit VMEM budget: double-buffered x + out tiles, single-buffered
    # weight/bias slabs, plus margin for compiler-internal scratch.
    vmem_need = (2 * tm * K * x_isz            # x tile, double-buffered
                 + K * R * w_isz + R * w_isz   # w0, b0 (single-buffered)
                 + R * R * w_isz + R * w_isz   # w, b   (single-buffered)
                 + 2 * tm * R * x_isz)         # output tile, double-buffered
    vmem_limit = min(64 << 20, max(32 << 20, vmem_need + (4 << 20)))

    kernel = functools.partial(_ann_fused_kernel, n_layers=n_ANNlayers)

    const1 = pl.Buffered(1)  # fetched once; no need to double-buffer

    cost = pl.CostEstimate(
        flops=2 * N * K * R + max(n_ANNlayers - 1, 0) * 2 * N * R * R,
        transcendentals=0,
        bytes_accessed=(N * K * x_isz
                        + (K * R + R + R * R + R) * w_isz
                        + N * R * x_isz),
    )

    out = pl.pallas_call(
        kernel,
        out_shape=jax.ShapeDtypeStruct((N, R), x.dtype),
        grid_spec=pltpu.PrefetchScalarGridSpec(
            num_scalar_prefetch=0,
            grid=(grid_m,),
            in_specs=[
                pl.BlockSpec((tm, K), lambda i: (i, 0)),   # x batch tile
                pl.BlockSpec((K, R), lambda i: (0, 0), pipeline_mode=const1),
                pl.BlockSpec((1, R), lambda i: (0, 0), pipeline_mode=const1),
                pl.BlockSpec((R, R), lambda i: (0, 0), pipeline_mode=const1),
                pl.BlockSpec((1, R), lambda i: (0, 0), pipeline_mode=const1),
            ],
            out_specs=pl.BlockSpec((tm, R), lambda i: (i, 0)),
        ),
        compiler_params=pltpu.CompilerParams(
            dimension_semantics=("parallel",),
            vmem_limit_bytes=int(vmem_limit),
        ),
        cost_estimate=cost,
    )(x, w0_t, b0, w_t, b)

    return out


def init_ann_params(key, input_size, reduced_size, dtype=jnp.float32):
    """Deterministic init mimicking nn.Linear's U(-1/sqrt(fan_in), 1/sqrt(fan_in)).

    Weights are stored pre-transposed to (in_features, out_features) and biases
    as (1, out_features) so the forward path does zero layout work.
    """
    k0w, k0b, k1w, k1b = jax.random.split(key, 4)
    s0 = 1.0 / float(input_size) ** 0.5
    s1 = 1.0 / float(reduced_size) ** 0.5
    fc0_w = jax.random.uniform(k0w, (reduced_size, input_size), jnp.float32, -s0, s0)
    fc0_b = jax.random.uniform(k0b, (reduced_size,), jnp.float32, -s0, s0)
    fc_w = jax.random.uniform(k1w, (reduced_size, reduced_size), jnp.float32, -s1, s1)
    fc_b = jax.random.uniform(k1b, (reduced_size,), jnp.float32, -s1, s1)
    return {
        "fc0_wt": fc0_w.T.astype(dtype),                 # (input_size, reduced_size)
        "fc0_b2d": fc0_b.reshape(1, -1).astype(dtype),   # (1, reduced_size)
        "fc_wt": fc_w.T.astype(dtype),                   # (reduced_size, reduced_size)
        "fc_b2d": fc_b.reshape(1, -1).astype(dtype),     # (1, reduced_size)
    }


def ann_forward_ref(params, x, n_ANNlayers=1):
    """Pure-JAX f32 reference for verification."""
    f32 = lambda a: a.astype(jnp.float32)
    y = f32(x) @ f32(params["fc0_wt"]) + f32(params["fc0_b2d"])
    for _ in range(n_ANNlayers - 1):
        y = jnp.maximum(y, 0.0) @ f32(params["fc_wt"]) + f32(params["fc_b2d"])
    return y


if __name__ == "__main__":
    # Small shapes consistent with the module (input_size=256, reduced_size=128).
    batch, input_size, reduced_size = 8, 256, 128

    key = jax.random.PRNGKey(0)
    kx, kp = jax.random.split(key)
    x = jax.random.normal(kx, (batch, input_size), jnp.float32)
    params = init_ann_params(kp, input_size, reduced_size)

    # Default config (n_ANNlayers=1): forward is just fc0.  f32 path is exact.
    out1 = ann_forward(params, x, n_ANNlayers=1)
    jax.block_until_ready(out1)
    ref1 = ann_forward_ref(params, x, n_ANNlayers=1)
    assert out1.shape == (batch, reduced_size)
    assert jnp.allclose(out1, ref1, atol=1e-5, rtol=1e-5)

    # Exercise the fused repeated fc(dropout(relu(.))) path too.
    out3 = ann_forward(params, x, n_ANNlayers=3)
    jax.block_until_ready(out3)
    ref3 = ann_forward_ref(params, x, n_ANNlayers=3)
    assert jnp.allclose(out3, ref3, atol=1e-5, rtol=1e-5)

    # Non-tile-aligned batch: handled by the cdiv grid + masked last tile
    # (no pad / slice HBM copies).
    xb = jax.random.normal(kx, (300, input_size), jnp.float32)
    outb = ann_forward(params, xb, n_ANNlayers=3)
    jax.block_until_ready(outb)
    refb = ann_forward_ref(params, xb, n_ANNlayers=3)
    assert outb.shape == (300, reduced_size)
    assert jnp.allclose(outb, refb, atol=1e-5, rtol=1e-5)

    # bf16 fast path: halves x HBM traffic and uses the native bf16 MXU path
    # (f32 accumulate).  Compared against the f32 reference on the same
    # bf16-rounded inputs with loosened tolerances.
    params_bf = jax.tree_util.tree_map(lambda p: p.astype(jnp.bfloat16), params)
    xb_bf = xb.astype(jnp.bfloat16)
    outbf = ann_forward(params_bf, xb_bf, n_ANNlayers=3)
    jax.block_until_ready(outbf)
    refbf = ann_forward_ref(params_bf, xb_bf, n_ANNlayers=3)
    assert outbf.dtype == jnp.bfloat16
    assert outbf.shape == (300, reduced_size)
    assert jnp.allclose(outbf.astype(jnp.float32), refbf, atol=5e-2, rtol=5e-2)

    print("KERNEL_OK")
</pallas_src>

<mosaic_0001>
module attributes {stable_mosaic.version = 11 : i64} {
  func.func @_ann_fused_kernel(%arg0: i32, %arg1: memref<8x256xf32, #tpu.memory_space<vmem>>, %arg2: memref<256x128xf32, #tpu.memory_space<vmem>>, %arg3: memref<1x128xf32, #tpu.memory_space<vmem>>, %arg4: memref<128x128xf32, #tpu.memory_space<vmem>>, %arg5: memref<1x128xf32, #tpu.memory_space<vmem>>, %arg6: memref<8x128xf32, #tpu.memory_space<vmem>>) attributes {dimension_semantics = [#tpu.dimension_semantics<parallel>], iteration_bounds = array<i64: 1>, scalar_prefetch = 0 : i64, scratch_operands = 0 : i64, tpu.core_type = #tpu.core_type<tc>, window_params = [{transform_indices = @transform_0, window_bounds = array<i64: 8, 256>}, {pipeline_mode = #tpu.pipeline_mode<synchronous>, transform_indices = @transform_1, window_bounds = array<i64: 256, 128>}, {pipeline_mode = #tpu.pipeline_mode<synchronous>, transform_indices = @transform_2, window_bounds = array<i64: 1, 128>}, {pipeline_mode = #tpu.pipeline_mode<synchronous>, transform_indices = @transform_3, window_bounds = array<i64: 128, 128>}, {pipeline_mode = #tpu.pipeline_mode<synchronous>, transform_indices = @transform_4, window_bounds = array<i64: 1, 128>}, {transform_indices = @transform_5, window_bounds = array<i64: 8, 128>}]} {
    %c0 = arith.constant 0 : index
    %c0_0 = arith.constant 0 : index
    %0 = vector.load %arg1[%c0, %c0_0] : memref<8x256xf32, #tpu.memory_space<vmem>>, vector<8x256xf32>
    %c0_1 = arith.constant 0 : index
    %c0_2 = arith.constant 0 : index
    %1 = vector.load %arg2[%c0_1, %c0_2] : memref<256x128xf32, #tpu.memory_space<vmem>>, vector<256x128xf32>
    %cst = arith.constant dense<0.000000e+00> : vector<8x128xf32>
    %2 = tpu.matmul %0, %1, %cst {dimension_numbers = #tpu.dot_dimension_numbers<[1], [0], [0], [1], [0, 0, 1, 1], [], []>} : vector<8x256xf32>, vector<256x128xf32>, vector<8x128xf32> -> vector<8x128xf32>
    %c0_3 = arith.constant 0 : index
    %c0_4 = arith.constant 0 : index
    %3 = vector.load %arg3[%c0_3, %c0_4] : memref<1x128xf32, #tpu.memory_space<vmem>>, vector<1x128xf32>
    %4 = vector.broadcast %3 : vector<1x128xf32> to vector<8x128xf32>
    %5 = arith.addf %2, %4 : vector<8x128xf32>
    %c0_5 = arith.constant 0 : index
    %c0_6 = arith.constant 0 : index
    %6 = vector.load %arg6[%c0_5, %c0_6] : memref<8x128xf32, #tpu.memory_space<vmem>>, vector<8x128xf32>
    tpu.vector_store %arg6[%c0_5, %c0_6], %5 {strides = array<i32>} : memref<8x128xf32, #tpu.memory_space<vmem>>, vector<8x128xf32>,
    return
  }
  func.func @transform_0(%arg0: i32) -> (i32, i32) {
    %c0_i32 = arith.constant 0 : i32
    %c0_i32_0 = arith.constant 0 : i32
    return %arg0, %c0_i32 : i32, i32
  }
  func.func @transform_1(%arg0: i32) -> (i32, i32) {
    %c0_i32 = arith.constant 0 : i32
    %c0_i32_0 = arith.constant 0 : i32
    %c0_i32_1 = arith.constant 0 : i32
    return %c0_i32, %c0_i32_0 : i32, i32
  }
  func.func @transform_2(%arg0: i32) -> (i32, i32) {
    %c0_i32 = arith.constant 0 : i32
    %c0_i32_0 = arith.constant 0 : i32
    %c0_i32_1 = arith.constant 0 : i32
    return %c0_i32, %c0_i32_0 : i32, i32
  }
  func.func @transform_3(%arg0: i32) -> (i32, i32) {
    %c0_i32 = arith.constant 0 : i32
    %c0_i32_0 = arith.constant 0 : i32
    %c0_i32_1 = arith.constant 0 : i32
    return %c0_i32, %c0_i32_0 : i32, i32
  }
  func.func @transform_4(%arg0: i32) -> (i32, i32) {
    %c0_i32 = arith.constant 0 : i32
    %c0_i32_0 = arith.constant 0 : i32
    %c0_i32_1 = arith.constant 0 : i32
    return %c0_i32, %c0_i32_0 : i32, i32
  }
  func.func @transform_5(%arg0: i32) -> (i32, i32) {
    %c0_i32 = arith.constant 0 : i32
    %c0_i32_0 = arith.constant 0 : i32
    return %arg0, %c0_i32 : i32, i32
  }
}

</mosaic_0001>

<llo_original>
// kernel: tpu_custom_call.1
$region0: #{tpu_custom_call.1}
  #allocation0 [shape = 'u32[]', space=smem, size = 0x4, offset = 0x4, fixed_abs, tag = 'smem constant byte address 0x4 - core index']
  #allocation1 [shape = 'u32[144,128]{1,0:T(1,128)}', space=vmem, size = 0x12000, scoped, tag = 'internal scratch']
  %s0 = inlined_call_operand.hbm [shape: f32[8,256], index: 0, kind: input, shape index: {}]
  %s1 = inlined_call_operand.hbm [shape: f32[256,128], index: 1, kind: input, shape index: {}]
  %s2 = inlined_call_operand.vmem [shape: f32[1,128], index: 2, kind: input, shape index: {}]
  %s3 = inlined_call_operand.hbm [shape: f32[128,128], index: 3, kind: input, shape index: {}]
  %s4 = inlined_call_operand.vmem [shape: f32[1,128], index: 4, kind: input, shape index: {}]
  %s5 = inlined_call_operand.hbm [shape: f32[8,128], index: 5, kind: output, shape index: {}]
  %s6 = sld [smem:[#allocation0]]
  $region42: #{tpu_custom_call.1} parent=0
    _
  %s8 = ssub.s32 1, %s6
  %s9 = scalar_select 0, %s8, %s6
  $region1: #{tpu_custom_call.1} parent=0
    #allocation2 [shape = 'u8[8192]{0}', space=vmem, size = 0x2000, scoped, tag = 'input window, operand 0, single buffered']
    #allocation3 [shape = 's32[1]{0}', space=sflag, size = 0x4, scoped, tag = 'scoped memory for tpu_custom_call.1']
    #allocation4 [shape = 's32[1]{0}', space=sflag, size = 0x4, scoped, tag = 'scoped memory for tpu_custom_call.1']
    #allocation5 [shape = 'u8[131072]{0}', space=vmem, size = 0x20000, scoped, tag = 'input window, operand 1, single buffered']
    #allocation6 [shape = 's32[1]{0}', space=sflag, size = 0x4, scoped, tag = 'scoped memory for tpu_custom_call.1']
    #allocation7 [shape = 'u8[65536]{0}', space=vmem, size = 0x10000, scoped, tag = 'input window, operand 3, single buffered']
    #allocation8 [shape = 'u8[4096]{0}', space=vmem, size = 0x1000, scoped, tag = 'output window, operand 0, single buffered']
    %10 = vsyncpa [#allocation3], 0
    %11 = vsyncpa [#allocation6], 0
    %12 = vsyncpa [#allocation4], 0
    // Predicated region
    $region2: #{tpu_custom_call.1} parent=1 // pred_check
      _
    $region3: #{tpu_custom_call.1} parent=1 // pred_check_branch
      %14 = sbr.rel (0) target = $region5
    $region4: #{tpu_custom_call.1} parent=1 // pred_region
      %s16 = ssub.s32 256, 256
      %17 = vsyncadd [#allocation3], %s16
      %s19 = sshll.u32 [#allocation2], 4
      %s20 = int_to_ptr.vmem [resolvable:$true] %s19
      %22 = dma.hbm_to_vmem [thread:$0]  %s0, 256, %s20, [#allocation3]
    $region5: #{tpu_custom_call.1} parent=1 // pred_fallthru
      _
    // Predicated region
    $region6: #{tpu_custom_call.1} parent=1 // pred_check
      _
    $region7: #{tpu_custom_call.1} parent=1 // pred_check_branch
      %24 = sbr.rel (0) target = $region9
    $region8: #{tpu_custom_call.1} parent=1 // pred_region
      %s26 = ssub.s32 4096, 4096
      %27 = vsyncadd [#allocation6], %s26
      %s28 = sshll.u32 [#allocation5], 4
      %s29 = int_to_ptr.vmem [resolvable:$true] %s28
      %34 = dma.hbm_to_vmem [thread:$0]  %s1, 4096, %s29, [#allocation6], 128, 128, 8
    $region9: #{tpu_custom_call.1} parent=1 // pred_fallthru
      _
    // Predicated region
    $region10: #{tpu_custom_call.1} parent=1 // pred_check
      _
    $region11: #{tpu_custom_call.1} parent=1 // pred_check_branch
      %36 = sbr.rel (0) target = $region13
    $region12: #{tpu_custom_call.1} parent=1 // pred_region
      _
    $region13: #{tpu_custom_call.1} parent=1 // pred_fallthru
      _
    // Predicated region
    $region14: #{tpu_custom_call.1} parent=1 // pred_check
      _
    $region15: #{tpu_custom_call.1} parent=1 // pred_check_branch
      %38 = sbr.rel (0) target = $region17
    $region16: #{tpu_custom_call.1} parent=1 // pred_region
      %s40 = ssub.s32 2048, 2048
      %41 = vsyncadd [#allocation6], %s40
      %s42 = sshll.u32 [#allocation7], 4
      %s43 = int_to_ptr.vmem [resolvable:$true] %s42
      %48 = dma.hbm_to_vmem [thread:$0]  %s3, 2048, %s43, [#allocation6], 128, 128, 8
    $region17: #{tpu_custom_call.1} parent=1 // pred_fallthru
      _
    // Predicated region
    $region18: #{tpu_custom_call.1} parent=1 // pred_check
      _
    $region19: #{tpu_custom_call.1} parent=1 // pred_check_branch
      %50 = sbr.rel (0) target = $region21
    $region20: #{tpu_custom_call.1} parent=1 // pred_region
      _
    $region21: #{tpu_custom_call.1} parent=1 // pred_fallthru
      _
    // Predicated region
    $region22: #{tpu_custom_call.1} parent=1 // pred_check
      _
    $region23: #{tpu_custom_call.1} parent=1 // pred_check_branch
      %52 = sbr.rel (0) target = $region25
    $region24: #{tpu_custom_call.1} parent=1 // pred_region
      %53 = dma.done [#allocation3], 256
    $region25: #{tpu_custom_call.1} parent=1 // pred_fallthru
      _
    // Predicated region
    $region26: #{tpu_custom_call.1} parent=1 // pred_check
      _
    $region27: #{tpu_custom_call.1} parent=1 // pred_check_branch
      %55 = sbr.rel (0) target = $region29
    $region28: #{tpu_custom_call.1} parent=1 // pred_region
      %56 = dma.done [#allocation6], 4096
    $region29: #{tpu_custom_call.1} parent=1 // pred_fallthru
      _
    // Predicated region
    $region30: #{tpu_custom_call.1} parent=1 // pred_check
      _
    $region31: #{tpu_custom_call.1} parent=1 // pred_check_branch
      %58 = sbr.rel (0) target = $region33
    $region32: #{tpu_custom_call.1} parent=1 // pred_region
      %59 = dma.done [#allocation6], 2048
    $region33: #{tpu_custom_call.1} parent=1 // pred_fallthru
      _
    %v60 = vld [vmem:[#allocation2] sm:$0xff]
    %v61 = vld [vmem:[#allocation2 + $0x8] sm:$0xff]
    %v62 = vld [vmem:[#allocation5] sm:$0xff]
    %v63 = vld [vmem:[#allocation5 + $0x8] sm:$0xff]
    %v64 = vld [vmem:[#allocation5 + $0x10] sm:$0xff]
    %v65 = vld [vmem:[#allocation5 + $0x18] sm:$0xff]
    %v66 = vld [vmem:[#allocation5 + $0x20] sm:$0xff]
    %v67 = vld [vmem:[#allocation5 + $0x28] sm:$0xff]
    %v68 = vld [vmem:[#allocation5 + $0x30] sm:$0xff]
    %v69 = vld [vmem:[#allocation5 + $0x38] sm:$0xff]
    %v70 = vld [vmem:[#allocation5 + $0x40] sm:$0xff]
    %v71 = vld [vmem:[#allocation5 + $0x48] sm:$0xff]
    %v72 = vld [vmem:[#allocation5 + $0x50] sm:$0xff]
    %v73 = vld [vmem:[#allocation5 + $0x58] sm:$0xff]
    %v74 = vld [vmem:[#allocation5 + $0x60] sm:$0xff]
    %v75 = vld [vmem:[#allocation5 + $0x68] sm:$0xff]
    %v76 = vld [vmem:[#allocation5 + $0x70] sm:$0xff]
    %v77 = vld [vmem:[#allocation5 + $0x78] sm:$0xff]
    %v78 = vld [vmem:[#allocation5 + $0x80] sm:$0xff]
    %v79 = vld [vmem:[#allocation5 + $0x88] sm:$0xff]
    %v80 = vld [vmem:[#allocation5 + $0x90] sm:$0xff]
    %v81 = vld [vmem:[#allocation5 + $0x98] sm:$0xff]
    %v82 = vld [vmem:[#allocation5 + $0xa0] sm:$0xff]
    %v83 = vld [vmem:[#allocation5 + $0xa8] sm:$0xff]
    %v84 = vld [vmem:[#allocation5 + $0xb0] sm:$0xff]
    %v85 = vld [vmem:[#allocation5 + $0xb8] sm:$0xff]
    %v86 = vld [vmem:[#allocation5 + $0xc0] sm:$0xff]
    %v87 = vld [vmem:[#allocation5 + $0xc8] sm:$0xff]
    %v88 = vld [vmem:[#allocation5 + $0xd0] sm:$0xff]
    %v89 = vld [vmem:[#allocation5 + $0xd8] sm:$0xff]
    %v90 = vld [vmem:[#allocation5 + $0xe0] sm:$0xff]
    %v91 = vld [vmem:[#allocation5 + $0xe8] sm:$0xff]
    %v92 = vld [vmem:[#allocation5 + $0xf0] sm:$0xff]
    %v93 = vld [vmem:[#allocation5 + $0xf8] sm:$0xff]
    %v94 = vld [vmem:[%s2] sm:$0x1]
    %v96 = vlaneseq
    %v97 = vshrl.u32 %v96, 7
    %v98 = vsub.s32 0, %v97
    %v99 = vrot.slane %v94, %v98
    %101 = vmatprep.subr.mxu0 0.0
    %102 = vmatpush1.msra.mxu0 %v77
    %103 = vmatprep.subr.mxu0 0.0
    %104 = vmatpush1.msra.mxu0 %v76
    %105 = vmatprep.subr.mxu0 0.0
    %106 = vmatpush1.msra.mxu0 %v75
    %107 = vmatprep.subr.mxu0 0.0
    %108 = vmatpush1.msra.mxu0 %v74
    %109 = vmatprep.subr.mxu0 0.0
    %110 = vmatpush1.msra.mxu0 %v73
    %111 = vmatprep.subr.mxu0 0.0
    %112 = vmatpush1.msra.mxu0 %v72
    %113 = vmatprep.subr.mxu0 0.0
    %114 = vmatpush1.msra.mxu0 %v71
    %115 = vmatprep.subr.mxu0 0.0
    %116 = vmatpush1.msra.mxu0 %v70
    %117 = vmatprep.subr.mxu0 0.0
    %118 = vmatpush1.msra.mxu0 %v69
    %119 = vmatprep.subr.mxu0 0.0
    %120 = vmatpush1.msra.mxu0 %v68
    %121 = vmatprep.subr.mxu0 0.0
    %122 = vmatpush1.msra.mxu0 %v67
    %123 = vmatprep.subr.mxu0 0.0
    %124 = vmatpush1.msra.mxu0 %v66
    %125 = vmatprep.subr.mxu0 0.0
    %126 = vmatpush1.msra.mxu0 %v65
    %127 = vmatprep.subr.mxu0 0.0
    %128 = vmatpush1.msra.mxu0 %v64
    %129 = vmatprep.subr.mxu0 0.0
    %130 = vmatpush1.msra.mxu0 %v63
    %131 = vmatprep.subr.mxu0 0.0
    %132 = vmatpush1.msra.mxu0 %v62
    %133 = vmatprep.subr.mxu0 0.0
    %134 = vmatpush2.msra.mxu0 %v93
    %135 = vmatprep.subr.mxu0 0.0
    %136 = vmatpush2.msra.mxu0 %v92
    %137 = vmatprep.subr.mxu0 0.0
    %138 = vmatpush2.msra.mxu0 %v91
    %139 = vmatprep.subr.mxu0 0.0
    %140 = vmatpush2.msra.mxu0 %v90
    %141 = vmatprep.subr.mxu0 0.0
    %142 = vmatpush2.msra.mxu0 %v89
    %143 = vmatprep.subr.mxu0 0.0
    %144 = vmatpush2.msra.mxu0 %v88
    %145 = vmatprep.subr.mxu0 0.0
    %146 = vmatpush2.msra.mxu0 %v87
    %147 = vmatprep.subr.mxu0 0.0
    %148 = vmatpush2.msra.mxu0 %v86
    %149 = vmatprep.subr.mxu0 0.0
    %150 = vmatpush2.msra.mxu0 %v85
    %151 = vmatprep.subr.mxu0 0.0
    %152 = vmatpush2.msra.mxu0 %v84
    %153 = vmatprep.subr.mxu0 0.0
    %154 = vmatpush2.msra.mxu0 %v83
    %155 = vmatprep.subr.mxu0 0.0
    %156 = vmatpush2.msra.mxu0 %v82
    %157 = vmatprep.subr.mxu0 0.0
    %158 = vmatpush2.msra.mxu0 %v81
    %159 = vmatprep.subr.mxu0 0.0
    %160 = vmatpush2.msra.mxu0 %v80
    %161 = vmatprep.subr.mxu0 0.0
    %162 = vmatpush2.msra.mxu0 %v79
    %163 = vmatprep.subr.mxu0 0.0
    %164 = vmatpush2.msra.mxu0 %v78
    %165 = vmatprep.mubr.f32.mxu0 %v61
    %166 = vmatmul.mubr.f32.gmra.mxu0 %v60
    %v167 = vpop.f32.mrf.mxu0
    %v168 = vadd.f32 %v99, %v167
    %v169 = vpop.f32.mrf.mxu0
    %170 = vdwg.mxu0
    %171 = vst [vmem:[#allocation8] sm:$0xff] %v168
    // Predicated region
    $region34: #{tpu_custom_call.1} parent=1 // pred_check
      _
    $region35: #{tpu_custom_call.1} parent=1 // pred_check_branch
      %173 = sbr.rel (0) target = $region37
    $region36: #{tpu_custom_call.1} parent=1 // pred_region
      %s175 = ssub.s32 128, 128
      %176 = vsyncadd [#allocation4], %s175
      %s178 = sshll.u32 [#allocation8], 4
      %s179 = int_to_ptr.vmem [resolvable:$true] %s178
      %181 = dma.vmem_to_hbm [thread:$0]  %s179, 128, %s5, [#allocation4]
    $region37: #{tpu_custom_call.1} parent=1 // pred_fallthru
      _
    // Predicated region
    $region38: #{tpu_custom_call.1} parent=1 // pred_check
      _
    $region39: #{tpu_custom_call.1} parent=1 // pred_check_branch
      %183 = sbr.rel (0) target = $region41
    $region40: #{tpu_custom_call.1} parent=1 // pred_region
      %184 = dma.done [#allocation4], 128
    $region41: #{tpu_custom_call.1} parent=1 // pred_fallthru
      _
    %185 = vsyncpa [#allocation3], 1
    %186 = vsyncpa [#allocation6], 1
    %187 = vsyncpa [#allocation4], 1

</llo_original>
